<compile_context>
chip_gen: v6e
topology: v6e:2x2x1
jax: 0.10.0
libtpu: 0.0.40
codegen_flags: <defaults>
</compile_context>

<pallas_src>
import jax
import jax.numpy as jnp
from jax.experimental import pallas as pl
from jax.experimental.pallas import tpu as pltpu


def _round_up(n, m):
    return ((n + m - 1) // m) * m


def _kernel_identity(x_ref, w0_ref, b0_ref, w1_ref, b1_ref, o_ref):
    """size_in == size_out: identity shortcut (residual add in f32)."""
    x = x_ref[...]                                             # (T, size_in), compute dtype
    h0 = jnp.maximum(x, 0.0)                                   # actvn(x)
    net = jnp.dot(h0, w0_ref[...],
                  preferred_element_type=jnp.float32) + b0_ref[...]   # fc_0, f32 acc
    h1 = jnp.maximum(net, 0.0).astype(x.dtype)                 # actvn(net), cast at MXU edge
    dx = jnp.dot(h1, w1_ref[...],
                 preferred_element_type=jnp.float32) + b1_ref[...]    # fc_1, f32 acc
    o_ref[...] = (x.astype(jnp.float32) + dx).astype(o_ref.dtype)


def _kernel_shortcut(x_ref, w0_ref, b0_ref, w1_ref, b1_ref, ws_ref, o_ref):
    """size_in != size_out: learned bias-free linear shortcut; both dots accumulate in f32."""
    x = x_ref[...]
    h0 = jnp.maximum(x, 0.0)
    net = jnp.dot(h0, w0_ref[...],
                  preferred_element_type=jnp.float32) + b0_ref[...]   # fc_0
    h1 = jnp.maximum(net, 0.0).astype(x.dtype)
    dx = jnp.dot(h1, w1_ref[...],
                 preferred_element_type=jnp.float32) + b1_ref[...]    # fc_1
    x_s = jnp.dot(x, ws_ref[...], preferred_element_type=jnp.float32)  # shortcut
    o_ref[...] = (x_s + dx).astype(o_ref.dtype)


def resnet_block_fc(x, params, *, tile_n=1024, compute_dtype=None,
                    vmem_budget_bytes=24 << 20):
    """ResnetBlockFC forward with a Pallas TPU kernel.

    x: (..., size_in) float32; leading dims are flattened into rows.
    params: dict with w0 (size_in, size_h), b0 (1, size_h),
            w1 (size_h, size_out), b1 (1, size_out),
            optionally ws (size_in, size_out) when size_in != size_out.
    compute_dtype: optional storage dtype for x / weights (e.g. jnp.bfloat16);
            accumulation, biases and the residual add stay f32.
    """
    orig_shape = x.shape
    size_in = orig_shape[-1]
    x2 = x.reshape(-1, size_in)
    N = x2.shape[0]
    size_h = params["w0"].shape[1]
    size_out = params["w1"].shape[1]
    has_shortcut = "ws" in params
    out_dtype = x.dtype
    cdt = x.dtype if compute_dtype is None else compute_dtype

    xc = x2.astype(cdt)                          # no-op copy unless bf16 storage requested
    w0 = params["w0"].astype(cdt)
    b0 = params["b0"].reshape(1, size_h).astype(jnp.float32)
    w1 = params["w1"].astype(cdt)
    b1 = params["b1"].reshape(1, size_out).astype(jnp.float32)

    # Row-tile selection: as large as requested, clamped so the double-buffered
    # x/out tiles + resident weights + f32 intermediates fit a conservative VMEM
    # budget (keeps v7x's 64 MiB VMEM and the default scoped limit safe).
    bpe = jnp.dtype(cdt).itemsize
    w_elems = size_in * size_h + size_h * size_out
    if has_shortcut:
        w_elems += size_in * size_out
    weight_bytes = w_elems * bpe + (size_h + size_out) * 4
    per_row_bytes = (size_in + size_out) * bpe * 2 + (size_h + 2 * size_out) * 4
    max_rows = max(8, (vmem_budget_bytes - 2 * weight_bytes) // max(per_row_bytes, 1))
    tile_eff = max(8, min(_round_up(tile_n, 8), (max_rows // 8) * 8, _round_up(N, 8)))

    grid = (pl.cdiv(N, tile_eff),)               # ragged N handled by edge-block masking

    def rep(shape):  # replicated (constant-index) operand: DMA'd once, stays resident
        return pl.BlockSpec(shape, lambda i: (0,) * len(shape))

    in_specs = [
        pl.BlockSpec((tile_eff, size_in), lambda i: (i, 0)),   # x rows
        rep((size_in, size_h)),                                # w0
        rep((1, size_h)),                                      # b0 (f32)
        rep((size_h, size_out)),                               # w1
        rep((1, size_out)),                                    # b1 (f32)
    ]
    args = [xc, w0, b0, w1, b1]
    kernel = _kernel_identity
    if has_shortcut:
        in_specs.append(rep((size_in, size_out)))              # ws
        args.append(params["ws"].astype(cdt))
        kernel = _kernel_shortcut

    out = pl.pallas_call(
        kernel,
        out_shape=jax.ShapeDtypeStruct((N, size_out), out_dtype),
        grid_spec=pltpu.PrefetchScalarGridSpec(
            num_scalar_prefetch=0,
            grid=grid,
            in_specs=in_specs,
            out_specs=pl.BlockSpec((tile_eff, size_out), lambda i: (i, 0)),
        ),
        compiler_params=pltpu.CompilerParams(
            dimension_semantics=("parallel",)),
    )(*args)

    return out.reshape(orig_shape[:-1] + (size_out,))


def resnet_block_fc_ref(x, params):
    """Pure-JAX reference (mirrors the PyTorch forward exactly)."""
    net = jnp.maximum(x, 0.0) @ params["w0"] + params["b0"]
    dx = jnp.maximum(net, 0.0) @ params["w1"] + params["b1"]
    x_s = x @ params["ws"] if "ws" in params else x
    return x_s + dx


def init_params(key, size_in, size_out=None, size_h=None):
    """Deterministic parameter construction (shapes per ResnetBlockFC.__init__).

    Note: PyTorch zero-inits fc_1.weight (init-time only); we use small random
    values so the second matmul path is exercised non-trivially.
    Weights are stored as (in, out) = PyTorch Linear weight transposed.
    """
    if size_out is None:
        size_out = size_in
    if size_h is None:
        size_h = min(size_in, size_out)
    k0, k1, k2, k3, k4 = jax.random.split(key, 5)
    params = {
        "w0": jax.random.normal(k0, (size_in, size_h), jnp.float32) * 0.1,
        "b0": jax.random.normal(k1, (1, size_h), jnp.float32) * 0.1,
        "w1": jax.random.normal(k2, (size_h, size_out), jnp.float32) * 0.1,
        "b1": jax.random.normal(k3, (1, size_out), jnp.float32) * 0.1,
    }
    if size_in != size_out:
        params["ws"] = jax.random.normal(k4, (size_in, size_out), jnp.float32) * 0.1
    return params


if __name__ == "__main__":
    key = jax.random.PRNGKey(0)
    kx, kp1, kp2 = jax.random.split(key, 3)

    # Case 1: size_in != size_out -> learned shortcut; 3-D input (batch=2, points=100).
    size_in, size_out = 32, 64           # size_h = min(32, 64) = 32
    x = jax.random.normal(kx, (2, 100, size_in), jnp.float32)
    params = init_params(kp1, size_in, size_out)
    out = jax.block_until_ready(resnet_block_fc(x, params))
    ref = resnet_block_fc_ref(x, params)
    assert out.shape == (2, 100, size_out)
    assert jnp.allclose(out, ref, atol=1e-5, rtol=1e-5)

    # Case 2: size_in == size_out -> identity shortcut; ragged flat row count.
    x2 = x.reshape(-1, size_in)          # N = 200 rows
    params2 = init_params(kp2, size_in)  # size_out = size_h = size_in = 32
    out2 = jax.block_until_ready(resnet_block_fc(x2, params2))
    ref2 = resnet_block_fc_ref(x2, params2)
    assert out2.shape == (200, size_in)
    assert jnp.allclose(out2, ref2, atol=1e-5, rtol=1e-5)

    # Case 3: multi-tile grid with a partial edge block + bf16 storage (f32 accumulation).
    N3 = 1000                            # 4 tiles of 256 -> last block masked
    x3 = jax.random.normal(kx, (N3, size_in), jnp.float32)
    out3 = jax.block_until_ready(
        resnet_block_fc(x3, params, tile_n=256, compute_dtype=jnp.bfloat16))
    ref3 = resnet_block_fc_ref(x3, params)
    assert out3.shape == (N3, size_out)
    assert jnp.allclose(out3, ref3, atol=3e-2, rtol=3e-2)

    print("KERNEL_OK")
</pallas_src>

<mosaic_0001>
module attributes {stable_mosaic.version = 11 : i64} {
  func.func @_kernel_shortcut(%arg0: i32, %arg1: memref<200x32xf32, #tpu.memory_space<vmem>>, %arg2: memref<32x32xf32, #tpu.memory_space<vmem>>, %arg3: memref<1x32xf32, #tpu.memory_space<vmem>>, %arg4: memref<32x64xf32, #tpu.memory_space<vmem>>, %arg5: memref<1x64xf32, #tpu.memory_space<vmem>>, %arg6: memref<32x64xf32, #tpu.memory_space<vmem>>, %arg7: memref<200x64xf32, #tpu.memory_space<vmem>>) attributes {dimension_semantics = [#tpu.dimension_semantics<parallel>], iteration_bounds = array<i64: 1>, scalar_prefetch = 0 : i64, scratch_operands = 0 : i64, tpu.core_type = #tpu.core_type<tc>, window_params = [{transform_indices = @transform_0, window_bounds = array<i64: 200, 32>}, {pipeline_mode = #tpu.pipeline_mode<synchronous>, transform_indices = @transform_1, window_bounds = array<i64: 32, 32>}, {pipeline_mode = #tpu.pipeline_mode<synchronous>, transform_indices = @transform_2, window_bounds = array<i64: 1, 32>}, {pipeline_mode = #tpu.pipeline_mode<synchronous>, transform_indices = @transform_3, window_bounds = array<i64: 32, 64>}, {pipeline_mode = #tpu.pipeline_mode<synchronous>, transform_indices = @transform_4, window_bounds = array<i64: 1, 64>}, {pipeline_mode = #tpu.pipeline_mode<synchronous>, transform_indices = @transform_5, window_bounds = array<i64: 32, 64>}, {transform_indices = @transform_6, window_bounds = array<i64: 200, 64>}]} {
    %c0 = arith.constant 0 : index
    %c0_0 = arith.constant 0 : index
    %0 = vector.load %arg1[%c0, %c0_0] : memref<200x32xf32, #tpu.memory_space<vmem>>, vector<200x32xf32>
    %cst = arith.constant 0.000000e+00 : f32
    %1 = vector.broadcast %cst : f32 to vector<200x32xf32>
    %2 = arith.maximumf %0, %1 : vector<200x32xf32>
    %c0_1 = arith.constant 0 : index
    %c0_2 = arith.constant 0 : index
    %3 = vector.load %arg2[%c0_1, %c0_2] : memref<32x32xf32, #tpu.memory_space<vmem>>, vector<32x32xf32>
    %cst_3 = arith.constant dense<0.000000e+00> : vector<200x32xf32>
    %4 = tpu.matmul %2, %3, %cst_3 {dimension_numbers = #tpu.dot_dimension_numbers<[1], [0], [0], [1], [0, 0, 1, 1], [], []>} : vector<200x32xf32>, vector<32x32xf32>, vector<200x32xf32> -> vector<200x32xf32>
    %c0_4 = arith.constant 0 : index
    %c0_5 = arith.constant 0 : index
    %5 = vector.load %arg3[%c0_4, %c0_5] : memref<1x32xf32, #tpu.memory_space<vmem>>, vector<1x32xf32>
    %6 = vector.broadcast %5 : vector<1x32xf32> to vector<200x32xf32>
    %7 = arith.addf %4, %6 : vector<200x32xf32>
    %cst_6 = arith.constant 0.000000e+00 : f32
    %8 = vector.broadcast %cst_6 : f32 to vector<200x32xf32>
    %9 = arith.maximumf %7, %8 : vector<200x32xf32>
    %c0_7 = arith.constant 0 : index
    %c0_8 = arith.constant 0 : index
    %10 = vector.load %arg4[%c0_7, %c0_8] : memref<32x64xf32, #tpu.memory_space<vmem>>, vector<32x64xf32>
    %cst_9 = arith.constant dense<0.000000e+00> : vector<200x64xf32>
    %11 = tpu.matmul %9, %10, %cst_9 {dimension_numbers = #tpu.dot_dimension_numbers<[1], [0], [0], [1], [0, 0, 1, 1], [], []>} : vector<200x32xf32>, vector<32x64xf32>, vector<200x64xf32> -> vector<200x64xf32>
    %c0_10 = arith.constant 0 : index
    %c0_11 = arith.constant 0 : index
    %12 = vector.load %arg5[%c0_10, %c0_11] : memref<1x64xf32, #tpu.memory_space<vmem>>, vector<1x64xf32>
    %13 = vector.broadcast %12 : vector<1x64xf32> to vector<200x64xf32>
    %14 = arith.addf %11, %13 : vector<200x64xf32>
    %c0_12 = arith.constant 0 : index
    %c0_13 = arith.constant 0 : index
    %15 = vector.load %arg6[%c0_12, %c0_13] : memref<32x64xf32, #tpu.memory_space<vmem>>, vector<32x64xf32>
    %cst_14 = arith.constant dense<0.000000e+00> : vector<200x64xf32>
    %16 = tpu.matmul %0, %15, %cst_14 {dimension_numbers = #tpu.dot_dimension_numbers<[1], [0], [0], [1], [0, 0, 1, 1], [], []>} : vector<200x32xf32>, vector<32x64xf32>, vector<200x64xf32> -> vector<200x64xf32>
    %17 = arith.addf %16, %14 : vector<200x64xf32>
    %c0_15 = arith.constant 0 : index
    %c0_16 = arith.constant 0 : index
    %18 = vector.load %arg7[%c0_15, %c0_16] : memref<200x64xf32, #tpu.memory_space<vmem>>, vector<200x64xf32>
    tpu.vector_store %arg7[%c0_15, %c0_16], %17 {strides = array<i32>} : memref<200x64xf32, #tpu.memory_space<vmem>>, vector<200x64xf32>,
    return
  }
  func.func @transform_0(%arg0: i32) -> (i32, i32) {
    %c0_i32 = arith.constant 0 : i32
    %c0_i32_0 = arith.constant 0 : i32
    return %arg0, %c0_i32 : i32, i32
  }
  func.func @transform_1(%arg0: i32) -> (i32, i32) {
    %c0_i32 = arith.constant 0 : i32
    %c0_i32_0 = arith.constant 0 : i32
    %c0_i32_1 = arith.constant 0 : i32
    return %c0_i32, %c0_i32_0 : i32, i32
  }
  func.func @transform_2(%arg0: i32) -> (i32, i32) {
    %c0_i32 = arith.constant 0 : i32
    %c0_i32_0 = arith.constant 0 : i32
    %c0_i32_1 = arith.constant 0 : i32
    return %c0_i32, %c0_i32_0 : i32, i32
  }
  func.func @transform_3(%arg0: i32) -> (i32, i32) {
    %c0_i32 = arith.constant 0 : i32
    %c0_i32_0 = arith.constant 0 : i32
    %c0_i32_1 = arith.constant 0 : i32
    return %c0_i32, %c0_i32_0 : i32, i32
  }
  func.func @transform_4(%arg0: i32) -> (i32, i32) {
    %c0_i32 = arith.constant 0 : i32
    %c0_i32_0 = arith.constant 0 : i32
    %c0_i32_1 = arith.constant 0 : i32
    return %c0_i32, %c0_i32_0 : i32, i32
  }
  func.func @transform_5(%arg0: i32) -> (i32, i32) {
    %c0_i32 = arith.constant 0 : i32
    %c0_i32_0 = arith.constant 0 : i32
    %c0_i32_1 = arith.constant 0 : i32
    return %c0_i32, %c0_i32_0 : i32, i32
  }
  func.func @transform_6(%arg0: i32) -> (i32, i32) {
    %c0_i32 = arith.constant 0 : i32
    %c0_i32_0 = arith.constant 0 : i32
    return %arg0, %c0_i32 : i32, i32
  }
}

</mosaic_0001>

<llo_original>
// kernel: tpu_custom_call.1
$region0: #{tpu_custom_call.1}
  #allocation0 [shape = 'u32[]', space=smem, size = 0x4, offset = 0x4, fixed_abs, tag = 'smem constant byte address 0x4 - core index']
  #allocation1 [shape = 'u32[144,128]{1,0:T(1,128)}', space=vmem, size = 0x12000, scoped, tag = 'internal scratch']
  %s0 = inlined_call_operand.vmem [shape: f32[200,32], index: 0, kind: input, shape index: {}]
  %s1 = inlined_call_operand.vmem [shape: f32[32,32], index: 1, kind: input, shape index: {}]
  %s2 = inlined_call_operand.vmem [shape: f32[1,32], index: 2, kind: input, shape index: {}]
  %s3 = inlined_call_operand.vmem [shape: f32[32,64], index: 3, kind: input, shape index: {}]
  %s4 = inlined_call_operand.vmem [shape: f32[1,64], index: 4, kind: input, shape index: {}]
  %s5 = inlined_call_operand.vmem [shape: f32[32,64], index: 5, kind: input, shape index: {}]
  %s6 = inlined_call_operand.vmem [shape: f32[200,64], index: 6, kind: output, shape index: {}]
  %s7 = sld [smem:[#allocation0]]
  $region34: #{tpu_custom_call.1} parent=0
    _
  %s9 = ssub.s32 1, %s7
  %s10 = scalar_select 0, %s9, %s7
  // Predicated region
  $region2: #{tpu_custom_call.1} parent=0 // pred_check
    _
  $region3: #{tpu_custom_call.1} parent=0 // pred_check_branch
    %12 = sbr.rel (0) target = $region5
  $region4: #{tpu_custom_call.1} parent=0 // pred_region
    _
  $region5: #{tpu_custom_call.1} parent=0 // pred_fallthru
    _
  // Predicated region
  $region6: #{tpu_custom_call.1} parent=0 // pred_check
    _
  $region7: #{tpu_custom_call.1} parent=0 // pred_check_branch
    %14 = sbr.rel (0) target = $region9
  $region8: #{tpu_custom_call.1} parent=0 // pred_region
    _
  $region9: #{tpu_custom_call.1} parent=0 // pred_fallthru
    _
  // Predicated region
  $region10: #{tpu_custom_call.1} parent=0 // pred_check
    _
  $region11: #{tpu_custom_call.1} parent=0 // pred_check_branch
    %16 = sbr.rel (0) target = $region13
  $region12: #{tpu_custom_call.1} parent=0 // pred_region
    _
  $region13: #{tpu_custom_call.1} parent=0 // pred_fallthru
    _
  // Predicated region
  $region14: #{tpu_custom_call.1} parent=0 // pred_check
    _
  $region15: #{tpu_custom_call.1} parent=0 // pred_check_branch
    %18 = sbr.rel (0) target = $region17
  $region16: #{tpu_custom_call.1} parent=0 // pred_region
    _
  $region17: #{tpu_custom_call.1} parent=0 // pred_fallthru
    _
  // Predicated region
  $region18: #{tpu_custom_call.1} parent=0 // pred_check
    _
  $region19: #{tpu_custom_call.1} parent=0 // pred_check_branch
    %20 = sbr.rel (0) target = $region21
  $region20: #{tpu_custom_call.1} parent=0 // pred_region
    _
  $region21: #{tpu_custom_call.1} parent=0 // pred_fallthru
    _
  // Predicated region
  $region22: #{tpu_custom_call.1} parent=0 // pred_check
    _
  $region23: #{tpu_custom_call.1} parent=0 // pred_check_branch
    %22 = sbr.rel (0) target = $region25
  $region24: #{tpu_custom_call.1} parent=0 // pred_region
    _
  $region25: #{tpu_custom_call.1} parent=0 // pred_fallthru
    _
  %v23 = vld [vmem:[%s0] sm:$0xff]
  %v24 = vld [vmem:[%s0 + $0x8] sm:$0xff]
  %v25 = vld [vmem:[%s0 + $0x10] sm:$0xff]
  %v26 = vld [vmem:[%s0 + $0x18] sm:$0xff]
  %v27 = vld [vmem:[%s0 + $0x20] sm:$0xff]
  %v28 = vld [vmem:[%s0 + $0x28] sm:$0xff]
  %v29 = vld [vmem:[%s0 + $0x30] sm:$0xff]
  %v30 = vld [vmem:[%s0 + $0x38] sm:$0xff]
  %v31 = vld [vmem:[%s0 + $0x40] sm:$0xff]
  %v32 = vld [vmem:[%s0 + $0x48] sm:$0xff]
  %v33 = vld [vmem:[%s0 + $0x50] sm:$0xff]
  %v34 = vld [vmem:[%s0 + $0x58] sm:$0xff]
  %v35 = vld [vmem:[%s0 + $0x60] sm:$0xff]
  %v36 = vld [vmem:[%s0 + $0x68] sm:$0xff]
  %v37 = vld [vmem:[%s0 + $0x70] sm:$0xff]
  %v38 = vld [vmem:[%s0 + $0x78] sm:$0xff]
  %v39 = vld [vmem:[%s0 + $0x80] sm:$0xff]
  %v40 = vld [vmem:[%s0 + $0x88] sm:$0xff]
  %v41 = vld [vmem:[%s0 + $0x90] sm:$0xff]
  %v42 = vld [vmem:[%s0 + $0x98] sm:$0xff]
  %v43 = vld [vmem:[%s0 + $0xa0] sm:$0xff]
  %v44 = vld [vmem:[%s0 + $0xa8] sm:$0xff]
  %v45 = vld [vmem:[%s0 + $0xb0] sm:$0xff]
  %v46 = vld [vmem:[%s0 + $0xb8] sm:$0xff]
  %v47 = vld [vmem:[%s0 + $0xc0] sm:$0xff]
  %v48 = vmax.f32 %v23, 0.0
  %v49 = vmax.f32 %v24, 0.0
  %v50 = vmax.f32 %v25, 0.0
  %v51 = vmax.f32 %v26, 0.0
  %v52 = vmax.f32 %v27, 0.0
  %v53 = vmax.f32 %v28, 0.0
  %v54 = vmax.f32 %v29, 0.0
  %v55 = vmax.f32 %v30, 0.0
  %v56 = vmax.f32 %v31, 0.0
  %v57 = vmax.f32 %v32, 0.0
  %v58 = vmax.f32 %v33, 0.0
  %v59 = vmax.f32 %v34, 0.0
  %v60 = vmax.f32 %v35, 0.0
  %v61 = vmax.f32 %v36, 0.0
  %v62 = vmax.f32 %v37, 0.0
  %v63 = vmax.f32 %v38, 0.0
  %v64 = vmax.f32 %v39, 0.0
  %v65 = vmax.f32 %v40, 0.0
  %v66 = vmax.f32 %v41, 0.0
  %v67 = vmax.f32 %v42, 0.0
  %v68 = vmax.f32 %v43, 0.0
  %v69 = vmax.f32 %v44, 0.0
  %v70 = vmax.f32 %v45, 0.0
  %v71 = vmax.f32 %v46, 0.0
  %v72 = vmax.f32 %v47, 0.0
  %v73 = vld [vmem:[%s1] sm:$0xff]
  %v74 = vld [vmem:[%s1 + $0x8] sm:$0xff]
  %v75 = vld [vmem:[%s1 + $0x10] sm:$0xff]
  %v76 = vld [vmem:[%s1 + $0x18] sm:$0xff]
  %v77 = vld [vmem:[%s2] sm:$0x1]
  %v79 = vlaneseq
  %v80 = vshrl.u32 %v79, 7
  %v81 = vsub.s32 0, %v80
  %v82 = vrot.slane %v77, %v81
  %vm84 = vcmask 261120
  %v86 = vsel %vm84, %v48, 0
  %v89 = vsel %vm84, %v49, 0
  %v92 = vsel %vm84, %v50, 0
  %v95 = vsel %vm84, %v51, 0
  %v98 = vsel %vm84, %v52, 0
  %v101 = vsel %vm84, %v53, 0
  %v104 = vsel %vm84, %v54, 0
  %v107 = vsel %vm84, %v55, 0
  %v110 = vsel %vm84, %v56, 0
  %v113 = vsel %vm84, %v57, 0
  %v116 = vsel %vm84, %v58, 0
  %v119 = vsel %vm84, %v59, 0
  %v122 = vsel %vm84, %v60, 0
  %v125 = vsel %vm84, %v61, 0
  %v128 = vsel %vm84, %v62, 0
  %v131 = vsel %vm84, %v63, 0
  %v134 = vsel %vm84, %v64, 0
  %v137 = vsel %vm84, %v65, 0
  %v140 = vsel %vm84, %v66, 0
  %v143 = vsel %vm84, %v67, 0
  %v146 = vsel %vm84, %v68, 0
  %v149 = vsel %vm84, %v69, 0
  %v152 = vsel %vm84, %v70, 0
  %v155 = vsel %vm84, %v71, 0
  %v158 = vsel %vm84, %v72, 0
  %160 = vmatprep.subr.mxu0 0.0
  %161 = vmatpush1.msra.mxu0 0.0
  %162 = vmatprep.subr.mxu0 0.0
  %163 = vmatpush1.msra.mxu0 0.0
  %164 = vmatprep.subr.mxu0 0.0
  %165 = vmatpush1.msra.mxu0 0.0
  %166 = vmatprep.subr.mxu0 0.0
  %167 = vmatpush1.msra.mxu0 0.0
  %168 = vmatprep.subr.mxu0 0.0
  %169 = vmatpush1.msra.mxu0 0.0
  %170 = vmatprep.subr.mxu0 0.0
  %171 = vmatpush1.msra.mxu0 0.0
  %172 = vmatprep.subr.mxu0 0.0
  %173 = vmatpush1.msra.mxu0 0.0
  %174 = vmatprep.subr.mxu0 0.0
  %175 = vmatpush1.msra.mxu0 0.0
  %176 = vmatprep.subr.mxu0 0.0
  %177 = vmatpush1.msra.mxu0 0.0
  %178 = vmatprep.subr.mxu0 0.0
  %179 = vmatpush1.msra.mxu0 0.0
  %180 = vmatprep.subr.mxu0 0.0
  %181 = vmatpush1.msra.mxu0 0.0
  %182 = vmatprep.subr.mxu0 0.0
  %183 = vmatpush1.msra.mxu0 0.0
  %184 = vmatprep.subr.mxu0 0.0
  %185 = vmatpush1.msra.mxu0 %v76
  %186 = vmatprep.subr.mxu0 0.0
  %187 = vmatpush1.msra.mxu0 %v75
  %188 = vmatprep.subr.mxu0 0.0
  %189 = vmatpush1.msra.mxu0 %v74
  %190 = vmatprep.subr.mxu0 0.0
  %191 = vmatpush1.msra.mxu0 %v73
  %192 = vmatprep.subr.mxu0 0.0
  %193 = vmatpush2.msra.mxu0 0.0
  %194 = vmatprep.subr.mxu0 0.0
  %195 = vmatpush2.msra.mxu0 0.0
  %196 = vmatprep.subr.mxu0 0.0
  %197 = vmatpush2.msra.mxu0 0.0
  %198 = vmatprep.subr.mxu0 0.0
  %199 = vmatpush2.msra.mxu0 0.0
  %200 = vmatprep.subr.mxu0 0.0
  %201 = vmatpush2.msra.mxu0 0.0
  %202 = vmatprep.subr.mxu0 0.0
  %203 = vmatpush2.msra.mxu0 0.0
  %204 = vmatprep.subr.mxu0 0.0
  %205 = vmatpush2.msra.mxu0 0.0
  %206 = vmatprep.subr.mxu0 0.0
  %207 = vmatpush2.msra.mxu0 0.0
  %208 = vmatprep.subr.mxu0 0.0
  %209 = vmatpush2.msra.mxu0 0.0
  %210 = vmatprep.subr.mxu0 0.0
  %211 = vmatpush2.msra.mxu0 0.0
  %212 = vmatprep.subr.mxu0 0.0
  %213 = vmatpush2.msra.mxu0 0.0
  %214 = vmatprep.subr.mxu0 0.0
  %215 = vmatpush2.msra.mxu0 0.0
  %216 = vmatprep.subr.mxu0 0.0
  %217 = vmatpush2.msra.mxu0 0.0
  %218 = vmatprep.subr.mxu0 0.0
  %219 = vmatpush2.msra.mxu0 0.0
  %220 = vmatprep.subr.mxu0 0.0
  %221 = vmatpush2.msra.mxu0 0.0
  %222 = vmatprep.subr.mxu0 0.0
  %223 = vmatpush2.msra.mxu0 0.0
  %224 = vmatprep.mubr.f32.mxu0 0.0
  %225 = vmatmul.mubr.f32.gmra.mxu0 %v86
  %v226 = vpop.f32.mrf.mxu0
  %v227 = vadd.f32 %v82, %v226
  %v228 = vpop.f32.mrf.mxu0
  %229 = vmatprep.mubr.f32.mxu0 0.0
  %230 = vmatmul.mubr.f32.gmra.mxu0 %v89
  %v231 = vpop.f32.mrf.mxu0
  %v232 = vadd.f32 %v82, %v231
  %v233 = vpop.f32.mrf.mxu0
  %234 = vmatprep.mubr.f32.mxu0 0.0
  %235 = vmatmul.mubr.f32.gmra.mxu0 %v92
  %v236 = vpop.f32.mrf.mxu0
  %v237 = vadd.f32 %v82, %v236
  %v238 = vpop.f32.mrf.mxu0
  %239 = vmatprep.mubr.f32.mxu0 0.0
  %240 = vmatmul.mubr.f32.gmra.mxu0 %v95
  %v241 = vpop.f32.mrf.mxu0
  %v242 = vadd.f32 %v82, %v241
  %v243 = vpop.f32.mrf.mxu0
  %244 = vmatprep.mubr.f32.mxu0 0.0
  %245 = vmatmul.mubr.f32.gmra.mxu0 %v98
  %v246 = vpop.f32.mrf.mxu0
  %v247 = vadd.f32 %v82, %v246
  %v248 = vpop.f32.mrf.mxu0
  %249 = vmatprep.mubr.f32.mxu0 0.0
  %250 = vmatmul.mubr.f32.gmra.mxu0 %v101
  %v251 = vpop.f32.mrf.mxu0
  %v252 = vadd.f32 %v82, %v251
  %v253 = vpop.f32.mrf.mxu0
  %254 = vmatprep.mubr.f32.mxu0 0.0
  %255 = vmatmul.mubr.f32.gmra.mxu0 %v104
  %v256 = vpop.f32.mrf.mxu0
  %v257 = vadd.f32 %v82, %v256
  %v258 = vpop.f32.mrf.mxu0
  %259 = vmatprep.mubr.f32.mxu0 0.0
  %260 = vmatmul.mubr.f32.gmra.mxu0 %v107
  %v261 = vpop.f32.mrf.mxu0
  %v262 = vadd.f32 %v82, %v261
  %v263 = vpop.f32.mrf.mxu0
  %264 = vmatprep.mubr.f32.mxu0 0.0
  %265 = vmatmul.mubr.f32.gmra.mxu0 %v110
  %v266 = vpop.f32.mrf.mxu0
  %v267 = vadd.f32 %v82, %v266
  %v268 = vpop.f32.mrf.mxu0
  %269 = vmatprep.mubr.f32.mxu0 0.0
  %270 = vmatmul.mubr.f32.gmra.mxu0 %v113
  %v271 = vpop.f32.mrf.mxu0
  %v272 = vadd.f32 %v82, %v271
  %v273 = vpop.f32.mrf.mxu0
  %274 = vmatprep.mubr.f32.mxu0 0.0
  %275 = vmatmul.mubr.f32.gmra.mxu0 %v116
  %v276 = vpop.f32.mrf.mxu0
  %v277 = vadd.f32 %v82, %v276
  %v278 = vpop.f32.mrf.mxu0
  %279 = vmatprep.mubr.f32.mxu0 0.0
  %280 = vmatmul.mubr.f32.gmra.mxu0 %v119
  %v281 = vpop.f32.mrf.mxu0
  %v282 = vadd.f32 %v82, %v281
  %v283 = vpop.f32.mrf.mxu0
  %284 = vmatprep.mubr.f32.mxu0 0.0
  %285 = vmatmul.mubr.f32.gmra.mxu0 %v122
  %v286 = vpop.f32.mrf.mxu0
  %v287 = vadd.f32 %v82, %v286
  %v288 = vpop.f32.mrf.mxu0
  %289 = vmatprep.mubr.f32.mxu0 0.0
  %290 = vmatmul.mubr.f32.gmra.mxu0 %v125
  %v291 = vpop.f32.mrf.mxu0
  %v292 = vadd.f32 %v82, %v291
  %v293 = vpop.f32.mrf.mxu0
  %294 = vmatprep.mubr.f32.mxu0 0.0
  %295 = vmatmul.mubr.f32.gmra.mxu0 %v128
  %v296 = vpop.f32.mrf.mxu0
  %v297 = vadd.f32 %v82, %v296
  %v298 = vpop.f32.mrf.mxu0
  %299 = vmatprep.mubr.f32.mxu0 0.0
  %300 = vmatmul.mubr.f32.gmra.mxu0 %v131
  %v301 = vpop.f32.mrf.mxu0
  %v302 = vadd.f32 %v82, %v301
  %v303 = vpop.f32.mrf.mxu0
  %304 = vmatprep.mubr.f32.mxu0 0.0
  %305 = vmatmul.mubr.f32.gmra.mxu0 %v134
  %v306 = vpop.f32.mrf.mxu0
  %v307 = vadd.f32 %v82, %v306
  %v308 = vpop.f32.mrf.mxu0
  %309 = vmatprep.mubr.f32.mxu0 0.0
  %310 = vmatmul.mubr.f32.gmra.mxu0 %v137
  %v311 = vpop.f32.mrf.mxu0
  %v312 = vadd.f32 %v82, %v311
  %v313 = vpop.f32.mrf.mxu0
  %314 = vmatprep.mubr.f32.mxu0 0.0
  %315 = vmatmul.mubr.f32.gmra.mxu0 %v140
  %v316 = vpop.f32.mrf.mxu0
  %v317 = vadd.f32 %v82, %v316
  %v318 = vpop.f32.mrf.mxu0
  %319 = vmatprep.mubr.f32.mxu0 0.0
  %320 = vmatmul.mubr.f32.gmra.mxu0 %v143
  %v321 = vpop.f32.mrf.mxu0
  %v322 = vadd.f32 %v82, %v321
  %v323 = vpop.f32.mrf.mxu0
  %324 = vmatprep.mubr.f32.mxu0 0.0
  %325 = vmatmul.mubr.f32.gmra.mxu0 %v146
  %v326 = vpop.f32.mrf.mxu0
  %v327 = vadd.f32 %v82, %v326
  %v328 = vpop.f32.mrf.mxu0
  %329 = vmatprep.mubr.f32.mxu0 0.0
  %330 = vmatmul.mubr.f32.gmra.mxu0 %v149
  %v331 = vpop.f32.mrf.mxu0
  %v332 = vadd.f32 %v82, %v331
  %v333 = vpop.f32.mrf.mxu0
  %334 = vmatprep.mubr.f32.mxu0 0.0
  %335 = vmatmul.mubr.f32.gmra.mxu0 %v152
  %v336 = vpop.f32.mrf.mxu0
  %v337 = vadd.f32 %v82, %v336
  %v338 = vpop.f32.mrf.mxu0
  %339 = vmatprep.mubr.f32.mxu0 0.0
  %340 = vmatmul.mubr.f32.gmra.mxu0 %v155
  %v341 = vpop.f32.mrf.mxu0
  %v342 = vadd.f32 %v82, %v341
  %v343 = vpop.f32.mrf.mxu0
  %344 = vmatprep.mubr.f32.mxu0 0.0
  %345 = vmatmul.mubr.f32.gmra.mxu0 %v158
  %v346 = vpop.f32.mrf.mxu0
  %v347 = vadd.f32 %v82, %v346
  %v348 = vpop.f32.mrf.mxu0
  %349 = vdwg.mxu0
  %v350 = vmax.f32 %v227, 0.0
  %v351 = vmax.f32 %v232, 0.0
  %v352 = vmax.f32 %v237, 0.0
  %v353 = vmax.f32 %v242, 0.0
  %v354 = vmax.f32 %v247, 0.0
  %v355 = vmax.f32 %v252, 0.0
  %v356 = vmax.f32 %v257, 0.0
  %v357 = vmax.f32 %v262, 0.0
  %v358 = vmax.f32 %v267, 0.0
  %v359 = vmax.f32 %v272, 0.0
  %v360 = vmax.f32 %v277, 0.0
  %v361 = vmax.f32 %v282, 0.0
  %v362 = vmax.f32 %v287, 0.0
  %v363 = vmax.f32 %v292, 0.0
  %v364 = vmax.f32 %v297, 0.0
  %v365 = vmax.f32 %v302, 0.0
  %v366 = vmax.f32 %v307, 0.0
  %v367 = vmax.f32 %v312, 0.0
  %v368 = vmax.f32 %v317, 0.0
  %v369 = vmax.f32 %v322, 0.0
  %v370 = vmax.f32 %v327, 0.0
  %v371 = vmax.f32 %v332, 0.0
  %v372 = vmax.f32 %v337, 0.0
  %v373 = vmax.f32 %v342, 0.0
  %v374 = vmax.f32 %v347, 0.0
  %v375 = vld [vmem:[%s3] sm:$0xff]
  %v376 = vld [vmem:[%s3 + $0x8] sm:$0xff]
  %v377 = vld [vmem:[%s3 + $0x10] sm:$0xff]
  %v378 = vld [vmem:[%s3 + $0x18] sm:$0xff]
  %v379 = vld [vmem:[%s4] sm:$0x1]
  %v381 = vlaneseq
  %v382 = vshrl.u32 %v381, 7
  %v383 = vsub.s32 0, %v382
  %v384 = vrot.slane %v379, %v383
  %v387 = vsel %vm84, %v350, 0
  %v390 = vsel %vm84, %v351, 0
  %v393 = vsel %vm84, %v352, 0
  %v396 = vsel %vm84, %v353, 0
  %v399 = vsel %vm84, %v354, 0
  %v402 = vsel %vm84, %v355, 0
  %v405 = vsel %vm84, %v356, 0
  %v408 = vsel %vm84, %v357, 0
  %v411 = vsel %vm84, %v358, 0
  %v414 = vsel %vm84, %v359, 0
  %v417 = vsel %vm84, %v360, 0
  %v420 = vsel %vm84, %v361, 0
  %v423 = vsel %vm84, %v362, 0
  %v426 = vsel %vm84, %v363, 0
  %v429 = vsel %vm84, %v364, 0
  %v432 = vsel %vm84, %v365, 0
  %v435 = vsel %vm84, %v366, 0
  %v438 = vsel %vm84, %v367, 0
  %v441 = vsel %vm84, %v368, 0
  %v444 = vsel %vm84, %v369, 0
  %v447 = vsel %vm84, %v370, 0
  %v450 = vsel %vm84, %v371, 0
  %v453 = vsel %vm84, %v372, 0
  %v456 = vsel %vm84, %v373, 0
  %v459 = vsel %vm84, %v374, 0
  %461 = vmatprep.subr.mxu0 0.0
  %462 = vmatpush1.msra.mxu0 0.0
  %463 = vmatprep.subr.mxu0 0.0
  %464 = vmatpush1.msra.mxu0 0.0
  %465 = vmatprep.subr.mxu0 0.0
  %466 = vmatpush1.msra.mxu0 0.0
  %467 = vmatprep.subr.mxu0 0.0
  %468 = vmatpush1.msra.mxu0 0.0
  %469 = vmatprep.subr.mxu0 0.0
  %470 = vmatpush1.msra.mxu0 0.0
  %471 = vmatprep.subr.mxu0 0.0
  %472 = vmatpush1.msra.mxu0 0.0
  %473 = vmatprep.subr.mxu0 0.0
  %474 = vmatpush1.msra.mxu0 0.0
  %475 = vmatprep.subr.mxu0 0.0
  %476 = vmatpush1.msra.mxu0 0.0
  %477 = vmatprep.subr.mxu0 0.0
  %478 = vmatpush1.msra.mxu0 0.0
  %479 = vmatprep.subr.mxu0 0.0
  %480 = vmatpush1.msra.mxu0 0.0
  %481 = vmatprep.subr.mxu0 0.0
  %482 = vmatpush1.msra.mxu0 0.0
  %483 = vmatprep.subr.mxu0 0.0
  %484 = vmatpush1.msra.mxu0 0.0
  %485 = vmatprep.subr.mxu0 0.0
  %486 = vmatpush1.msra.mxu0 %v378
  %487 = vmatprep.subr.mxu0 0.0
  %488 = vmatpush1.msra.mxu0 %v377
  %489 = vmatprep.subr.mxu0 0.0
  %490 = vmatpush1.msra.mxu0 %v376
  %491 = vmatprep.subr.mxu0 0.0
  %492 = vmatpush1.msra.mxu0 %v375
  %493 = vmatprep.subr.mxu0 0.0
  %494 = vmatpush2.msra.mxu0 0.0
  %495 = vmatprep.subr.mxu0 0.0
  %496 = vmatpush2.msra.mxu0 0.0
  %497 = vmatprep.subr.mxu0 0.0
  %498 = vmatpush2.msra.mxu0 0.0
  %499 = vmatprep.subr.mxu0 0.0
  %500 = vmatpush2.msra.mxu0 0.0
  %501 = vmatprep.subr.mxu0 0.0
  %502 = vmatpush2.msra.mxu0 0.0
  %503 = vmatprep.subr.mxu0 0.0
  %504 = vmatpush2.msra.mxu0 0.0
  %505 = vmatprep.subr.mxu0 0.0
  %506 = vmatpush2.msra.mxu0 0.0
  %507 = vmatprep.subr.mxu0 0.0
  %508 = vmatpush2.msra.mxu0 0.0
  %509 = vmatprep.subr.mxu0 0.0
  %510 = vmatpush2.msra.mxu0 0.0
  %511 = vmatprep.subr.mxu0 0.0
  %512 = vmatpush2.msra.mxu0 0.0
  %513 = vmatprep.subr.mxu0 0.0
  %514 = vmatpush2.msra.mxu0 0.0
  %515 = vmatprep.subr.mxu0 0.0
  %516 = vmatpush2.msra.mxu0 0.0
  %517 = vmatprep.subr.mxu0 0.0
  %518 = vmatpush2.msra.mxu0 0.0
  %519 = vmatprep.subr.mxu0 0.0
  %520 = vmatpush2.msra.mxu0 0.0
  %521 = vmatprep.subr.mxu0 0.0
  %522 = vmatpush2.msra.mxu0 0.0
  %523 = vmatprep.subr.mxu0 0.0
  %524 = vmatpush2.msra.mxu0 0.0
  %525 = vmatprep.mubr.f32.mxu0 0.0
  %526 = vmatmul.mubr.f32.gmra.mxu0 %v387
  %v527 = vpop.f32.mrf.mxu0
  %v528 = vadd.f32 %v384, %v527
  %v529 = vpop.f32.mrf.mxu0
  %530 = vmatprep.mubr.f32.mxu0 0.0
  %531 = vmatmul.mubr.f32.gmra.mxu0 %v390
  %v532 = vpop.f32.mrf.mxu0
  %v533 = vadd.f32 %v384, %v532
  %v534 = vpop.f32.mrf.mxu0
  %535 = vmatprep.mubr.f32.mxu0 0.0
  %536 = vmatmul.mubr.f32.gmra.mxu0 %v393
  %v537 = vpop.f32.mrf.mxu0
  %v538 = vadd.f32 %v384, %v537
  %v539 = vpop.f32.mrf.mxu0
  %540 = vmatprep.mubr.f32.mxu0 0.0
  %541 = vmatmul.mubr.f32.gmra.mxu0 %v396
  %v542 = vpop.f32.mrf.mxu0
  %v543 = vadd.f32 %v384, %v542
  %v544 = vpop.f32.mrf.mxu0
  %545 = vmatprep.mubr.f32.mxu0 0.0
  %546 = vmatmul.mubr.f32.gmra.mxu0 %v399
  %v547 = vpop.f32.mrf.mxu0
  %v548 = vadd.f32 %v384, %v547
  %v549 = vpop.f32.mrf.mxu0
  %550 = vmatprep.mubr.f32.mxu0 0.0
  %551 = vmatmul.mubr.f32.gmra.mxu0 %v402
  %v552 = vpop.f32.mrf.mxu0
  %v553 = vadd.f32 %v384, %v552
  %v554 = vpop.f32.mrf.mxu0
  %555 = vmatprep.mubr.f32.mxu0 0.0
  %556 = vmatmul.mubr.f32.gmra.mxu0 %v405
  %v557 = vpop.f32.mrf.mxu0
  %v558 = vadd.f32 %v384, %v557
  %v559 = vpop.f32.mrf.mxu0
  %560 = vmatprep.mubr.f32.mxu0 0.0
  %561 = vmatmul.mubr.f32.gmra.mxu0 %v408
  %v562 = vpop.f32.mrf.mxu0
  %v563 = vadd.f32 %v384, %v562
  %v564 = vpop.f32.mrf.mxu0
  %565 = vmatprep.mubr.f32.mxu0 0.0
  %566 = vmatmul.mubr.f32.gmra.mxu0 %v411
  %v567 = vpop.f32.mrf.mxu0
  %v568 = vadd.f32 %v384, %v567
  %v569 = vpop.f32.mrf.mxu0
  %570 = vmatprep.mubr.f32.mxu0 0.0
  %571 = vmatmul.mubr.f32.gmra.mxu0 %v414
  %v572 = vpop.f32.mrf.mxu0
  %v573 = vadd.f32 %v384, %v572
  %v574 = vpop.f32.mrf.mxu0
  %575 = vmatprep.mubr.f32.mxu0 0.0
  %576 = vmatmul.mubr.f32.gmra.mxu0 %v417
  %v577 = vpop.f32.mrf.mxu0
  %v578 = vadd.f32 %v384, %v577
  %v579 = vpop.f32.mrf.mxu0
  %580 = vmatprep.mubr.f32.mxu0 0.0
  %581 = vmatmul.mubr.f32.gmra.mxu0 %v420
  %v582 = vpop.f32.mrf.mxu0
  %v583 = vadd.f32 %v384, %v582
  %v584 = vpop.f32.mrf.mxu0
  %585 = vmatprep.mubr.f32.mxu0 0.0
  %586 = vmatmul.mubr.f32.gmra.mxu0 %v423
  %v587 = vpop.f32.mrf.mxu0
  %v588 = vadd.f32 %v384, %v587
  %v589 = vpop.f32.mrf.mxu0
  %590 = vmatprep.mubr.f32.mxu0 0.0
  %591 = vmatmul.mubr.f32.gmra.mxu0 %v426
  %v592 = vpop.f32.mrf.mxu0
  %v593 = vadd.f32 %v384, %v592
  %v594 = vpop.f32.mrf.mxu0
  %595 = vmatprep.mubr.f32.mxu0 0.0
  %596 = vmatmul.mubr.f32.gmra.mxu0 %v429
  %v597 = vpop.f32.mrf.mxu0
  %v598 = vadd.f32 %v384, %v597
  %v599 = vpop.f32.mrf.mxu0
  %600 = vmatprep.mubr.f32.mxu0 0.0
  %601 = vmatmul.mubr.f32.gmra.mxu0 %v432
  %v602 = vpop.f32.mrf.mxu0
  %v603 = vadd.f32 %v384, %v602
  %v604 = vpop.f32.mrf.mxu0
  %605 = vmatprep.mubr.f32.mxu0 0.0
  %606 = vmatmul.mubr.f32.gmra.mxu0 %v435
  %v607 = vpop.f32.mrf.mxu0
  %v608 = vadd.f32 %v384, %v607
  %v609 = vpop.f32.mrf.mxu0
  %610 = vmatprep.mubr.f32.mxu0 0.0
  %611 = vmatmul.mubr.f32.gmra.mxu0 %v438
  %v612 = vpop.f32.mrf.mxu0
  %v613 = vadd.f32 %v384, %v612
  %v614 = vpop.f32.mrf.mxu0
  %615 = vmatprep.mubr.f32.mxu0 0.0
  %616 = vmatmul.mubr.f32.gmra.mxu0 %v441
  %v617 = vpop.f32.mrf.mxu0
  %v618 = vadd.f32 %v384, %v617
  %v619 = vpop.f32.mrf.mxu0
  %620 = vmatprep.mubr.f32.mxu0 0.0
  %621 = vmatmul.mubr.f32.gmra.mxu0 %v444
  %v622 = vpop.f32.mrf.mxu0
  %v623 = vadd.f32 %v384, %v622
  %v624 = vpop.f32.mrf.mxu0
  %625 = vmatprep.mubr.f32.mxu0 0.0
  %626 = vmatmul.mubr.f32.gmra.mxu0 %v447
  %v627 = vpop.f32.mrf.mxu0
  %v628 = vadd.f32 %v384, %v627
  %v629 = vpop.f32.mrf.mxu0
  %630 = vmatprep.mubr.f32.mxu0 0.0
  %631 = vmatmul.mubr.f32.gmra.mxu0 %v450
  %v632 = vpop.f32.mrf.mxu0
  %v633 = vadd.f32 %v384, %v632
  %v634 = vpop.f32.mrf.mxu0
  %635 = vmatprep.mubr.f32.mxu0 0.0
  %636 = vmatmul.mubr.f32.gmra.mxu0 %v453
  %v637 = vpop.f32.mrf.mxu0
  %v638 = vadd.f32 %v384, %v637
  %v639 = vpop.f32.mrf.mxu0
  %640 = vmatprep.mubr.f32.mxu0 0.0
  %641 = vmatmul.mubr.f32.gmra.mxu0 %v456
  %v642 = vpop.f32.mrf.mxu0
  %v643 = vadd.f32 %v384, %v642
  %v644 = vpop.f32.mrf.mxu0
  %645 = vmatprep.mubr.f32.mxu0 0.0
  %646 = vmatmul.mubr.f32.gmra.mxu0 %v459
  %v647 = vpop.f32.mrf.mxu0
  %v648 = vadd.f32 %v384, %v647
  %v649 = vpop.f32.mrf.mxu0
  %650 = vdwg.mxu0
  %v651 = vld [vmem:[%s5] sm:$0xff]
  %v652 = vld [vmem:[%s5 + $0x8] sm:$0xff]
  %v653 = vld [vmem:[%s5 + $0x10] sm:$0xff]
  %v654 = vld [vmem:[%s5 + $0x18] sm:$0xff]
  %v656 = vsel %vm84, %v23, 0
  %v659 = vsel %vm84, %v24, 0
  %v662 = vsel %vm84, %v25, 0
  %v665 = vsel %vm84, %v26, 0
  %v668 = vsel %vm84, %v27, 0
  %v671 = vsel %vm84, %v28, 0
  %v674 = vsel %vm84, %v29, 0
  %v677 = vsel %vm84, %v30, 0
  %v680 = vsel %vm84, %v31, 0
  %v683 = vsel %vm84, %v32, 0
  %v686 = vsel %vm84, %v33, 0
  %v689 = vsel %vm84, %v34, 0
  %v692 = vsel %vm84, %v35, 0
  %v695 = vsel %vm84, %v36, 0
  %v698 = vsel %vm84, %v37, 0
  %v701 = vsel %vm84, %v38, 0
  %v704 = vsel %vm84, %v39, 0
  %v707 = vsel %vm84, %v40, 0
  %v710 = vsel %vm84, %v41, 0
  %v713 = vsel %vm84, %v42, 0
  %v716 = vsel %vm84, %v43, 0
  %v719 = vsel %vm84, %v44, 0
  %v722 = vsel %vm84, %v45, 0
  %v725 = vsel %vm84, %v46, 0
  %v728 = vsel %vm84, %v47, 0
  %730 = vmatprep.subr.mxu0 0.0
  %731 = vmatpush1.msra.mxu0 0.0
  %732 = vmatprep.subr.mxu0 0.0
  %733 = vmatpush1.msra.mxu0 0.0
  %734 = vmatprep.subr.mxu0 0.0
  %735 = vmatpush1.msra.mxu0 0.0
  %736 = vmatprep.subr.mxu0 0.0
  %737 = vmatpush1.msra.mxu0 0.0
  %738 = vmatprep.subr.mxu0 0.0
  %739 = vmatpush1.msra.mxu0 0.0
  %740 = vmatprep.subr.mxu0 0.0
  %741 = vmatpush1.msra.mxu0 0.0
  %742 = vmatprep.subr.mxu0 0.0
  %743 = vmatpush1.msra.mxu0 0.0
  %744 = vmatprep.subr.mxu0 0.0
  %745 = vmatpush1.msra.mxu0 0.0
  %746 = vmatprep.subr.mxu0 0.0
  %747 = vmatpush1.msra.mxu0 0.0
  %748 = vmatprep.subr.mxu0 0.0
  %749 = vmatpush1.msra.mxu0 0.0
  %750 = vmatprep.subr.mxu0 0.0
  %751 = vmatpush1.msra.mxu0 0.0
  %752 = vmatprep.subr.mxu0 0.0
  %753 = vmatpush1.msra.mxu0 0.0
  %754 = vmatprep.subr.mxu0 0.0
  %755 = vmatpush1.msra.mxu0 %v654
  %756 = vmatprep.subr.mxu0 0.0
  %757 = vmatpush1.msra.mxu0 %v653
  %758 = vmatprep.subr.mxu0 0.0
  %759 = vmatpush1.msra.mxu0 %v652
  %760 = vmatprep.subr.mxu0 0.0
  %761 = vmatpush1.msra.mxu0 %v651
  %762 = vmatprep.subr.mxu0 0.0
  %763 = vmatpush2.msra.mxu0 0.0
  %764 = vmatprep.subr.mxu0 0.0
  %765 = vmatpush2.msra.mxu0 0.0
  %766 = vmatprep.subr.mxu0 0.0
  %767 = vmatpush2.msra.mxu0 0.0
  %768 = vmatprep.subr.mxu0 0.0
  %769 = vmatpush2.msra.mxu0 0.0
  %770 = vmatprep.subr.mxu0 0.0
  %771 = vmatpush2.msra.mxu0 0.0
  %772 = vmatprep.subr.mxu0 0.0
  %773 = vmatpush2.msra.mxu0 0.0
  %774 = vmatprep.subr.mxu0 0.0
  %775 = vmatpush2.msra.mxu0 0.0
  %776 = vmatprep.subr.mxu0 0.0
  %777 = vmatpush2.msra.mxu0 0.0
  %778 = vmatprep.subr.mxu0 0.0
  %779 = vmatpush2.msra.mxu0 0.0
  %780 = vmatprep.subr.mxu0 0.0
  %781 = vmatpush2.msra.mxu0 0.0
  %782 = vmatprep.subr.mxu0 0.0
  %783 = vmatpush2.msra.mxu0 0.0
  %784 = vmatprep.subr.mxu0 0.0
  %785 = vmatpush2.msra.mxu0 0.0
  %786 = vmatprep.subr.mxu0 0.0
  %787 = vmatpush2.msra.mxu0 0.0
  %788 = vmatprep.subr.mxu0 0.0
  %789 = vmatpush2.msra.mxu0 0.0
  %790 = vmatprep.subr.mxu0 0.0
  %791 = vmatpush2.msra.mxu0 0.0
  %792 = vmatprep.subr.mxu0 0.0
  %793 = vmatpush2.msra.mxu0 0.0
  %794 = vmatprep.mubr.f32.mxu0 0.0
  %795 = vmatmul.mubr.f32.gmra.mxu0 %v656
  %v796 = vpop.f32.mrf.mxu0
  %v797 = vadd.f32 %v528, %v796
  %v798 = vpop.f32.mrf.mxu0
  %799 = vmatprep.mubr.f32.mxu0 0.0
  %800 = vmatmul.mubr.f32.gmra.mxu0 %v659
  %v801 = vpop.f32.mrf.mxu0
  %v802 = vadd.f32 %v533, %v801
  %v803 = vpop.f32.mrf.mxu0
  %804 = vmatprep.mubr.f32.mxu0 0.0
  %805 = vmatmul.mubr.f32.gmra.mxu0 %v662
  %v806 = vpop.f32.mrf.mxu0
  %v807 = vadd.f32 %v538, %v806
  %v808 = vpop.f32.mrf.mxu0
  %809 = vmatprep.mubr.f32.mxu0 0.0
  %810 = vmatmul.mubr.f32.gmra.mxu0 %v665
  %v811 = vpop.f32.mrf.mxu0
  %v812 = vadd.f32 %v543, %v811
  %v813 = vpop.f32.mrf.mxu0
  %814 = vmatprep.mubr.f32.mxu0 0.0
  %815 = vmatmul.mubr.f32.gmra.mxu0 %v668
  %v816 = vpop.f32.mrf.mxu0
  %v817 = vadd.f32 %v548, %v816
  %v818 = vpop.f32.mrf.mxu0
  %819 = vmatprep.mubr.f32.mxu0 0.0
  %820 = vmatmul.mubr.f32.gmra.mxu0 %v671
  %v821 = vpop.f32.mrf.mxu0
  %v822 = vadd.f32 %v553, %v821
  %v823 = vpop.f32.mrf.mxu0
  %824 = vmatprep.mubr.f32.mxu0 0.0
  %825 = vmatmul.mubr.f32.gmra.mxu0 %v674
  %v826 = vpop.f32.mrf.mxu0
  %v827 = vadd.f32 %v558, %v826
  %v828 = vpop.f32.mrf.mxu0
  %829 = vmatprep.mubr.f32.mxu0 0.0
  %830 = vmatmul.mubr.f32.gmra.mxu0 %v677
  %v831 = vpop.f32.mrf.mxu0
  %v832 = vadd.f32 %v563, %v831
  %v833 = vpop.f32.mrf.mxu0
  %834 = vmatprep.mubr.f32.mxu0 0.0
  %835 = vmatmul.mubr.f32.gmra.mxu0 %v680
  %v836 = vpop.f32.mrf.mxu0
  %v837 = vadd.f32 %v568, %v836
  %v838 = vpop.f32.mrf.mxu0
  %839 = vmatprep.mubr.f32.mxu0 0.0
  %840 = vmatmul.mubr.f32.gmra.mxu0 %v683
  %v841 = vpop.f32.mrf.mxu0
  %v842 = vadd.f32 %v573, %v841
  %v843 = vpop.f32.mrf.mxu0
  %844 = vmatprep.mubr.f32.mxu0 0.0
  %845 = vmatmul.mubr.f32.gmra.mxu0 %v686
  %v846 = vpop.f32.mrf.mxu0
  %v847 = vadd.f32 %v578, %v846
  %v848 = vpop.f32.mrf.mxu0
  %849 = vmatprep.mubr.f32.mxu0 0.0
  %850 = vmatmul.mubr.f32.gmra.mxu0 %v689
  %v851 = vpop.f32.mrf.mxu0
  %v852 = vadd.f32 %v583, %v851
  %v853 = vpop.f32.mrf.mxu0
  %854 = vmatprep.mubr.f32.mxu0 0.0
  %855 = vmatmul.mubr.f32.gmra.mxu0 %v692
  %v856 = vpop.f32.mrf.mxu0
  %v857 = vadd.f32 %v588, %v856
  %v858 = vpop.f32.mrf.mxu0
  %859 = vmatprep.mubr.f32.mxu0 0.0
  %860 = vmatmul.mubr.f32.gmra.mxu0 %v695
  %v861 = vpop.f32.mrf.mxu0
  %v862 = vadd.f32 %v593, %v861
  %v863 = vpop.f32.mrf.mxu0
  %864 = vmatprep.mubr.f32.mxu0 0.0
  %865 = vmatmul.mubr.f32.gmra.mxu0 %v698
  %v866 = vpop.f32.mrf.mxu0
  %v867 = vadd.f32 %v598, %v866
  %v868 = vpop.f32.mrf.mxu0
  %869 = vmatprep.mubr.f32.mxu0 0.0
  %870 = vmatmul.mubr.f32.gmra.mxu0 %v701
  %v871 = vpop.f32.mrf.mxu0
  %v872 = vadd.f32 %v603, %v871
  %v873 = vpop.f32.mrf.mxu0
  %874 = vmatprep.mubr.f32.mxu0 0.0
  %875 = vmatmul.mubr.f32.gmra.mxu0 %v704
  %v876 = vpop.f32.mrf.mxu0
  %v877 = vadd.f32 %v608, %v876
  %v878 = vpop.f32.mrf.mxu0
  %879 = vmatprep.mubr.f32.mxu0 0.0
  %880 = vmatmul.mubr.f32.gmra.mxu0 %v707
  %v881 = vpop.f32.mrf.mxu0
  %v882 = vadd.f32 %v613, %v881
  %v883 = vpop.f32.mrf.mxu0
  %884 = vmatprep.mubr.f32.mxu0 0.0
  %885 = vmatmul.mubr.f32.gmra.mxu0 %v710
  %v886 = vpop.f32.mrf.mxu0
  %v887 = vadd.f32 %v618, %v886
  %v888 = vpop.f32.mrf.mxu0
  %889 = vmatprep.mubr.f32.mxu0 0.0
  %890 = vmatmul.mubr.f32.gmra.mxu0 %v713
  %v891 = vpop.f32.mrf.mxu0
  %v892 = vadd.f32 %v623, %v891
  %v893 = vpop.f32.mrf.mxu0
  %894 = vmatprep.mubr.f32.mxu0 0.0
  %895 = vmatmul.mubr.f32.gmra.mxu0 %v716
  %v896 = vpop.f32.mrf.mxu0
  %v897 = vadd.f32 %v628, %v896
  %v898 = vpop.f32.mrf.mxu0
  %899 = vmatprep.mubr.f32.mxu0 0.0
  %900 = vmatmul.mubr.f32.gmra.mxu0 %v719
  %v901 = vpop.f32.mrf.mxu0
  %v902 = vadd.f32 %v633, %v901
  %v903 = vpop.f32.mrf.mxu0
  %904 = vmatprep.mubr.f32.mxu0 0.0
  %905 = vmatmul.mubr.f32.gmra.mxu0 %v722
  %v906 = vpop.f32.mrf.mxu0
  %v907 = vadd.f32 %v638, %v906
  %v908 = vpop.f32.mrf.mxu0
  %909 = vmatprep.mubr.f32.mxu0 0.0
  %910 = vmatmul.mubr.f32.gmra.mxu0 %v725
  %v911 = vpop.f32.mrf.mxu0
  %v912 = vadd.f32 %v643, %v911
  %v913 = vpop.f32.mrf.mxu0
  %914 = vmatprep.mubr.f32.mxu0 0.0
  %915 = vmatmul.mubr.f32.gmra.mxu0 %v728
  %v916 = vpop.f32.mrf.mxu0
  %v917 = vadd.f32 %v648, %v916
  %v918 = vpop.f32.mrf.mxu0
  %919 = vdwg.mxu0
  %vm920 = vcmask 523264
  %921 = vst.msk [vmem:[%s6] sm:$0xff] %vm920, %v797
  %922 = vst.msk [vmem:[%s6 + $0x8] sm:$0xff] %vm920, %v802
  %923 = vst.msk [vmem:[%s6 + $0x10] sm:$0xff] %vm920, %v807
  %924 = vst.msk [vmem:[%s6 + $0x18] sm:$0xff] %vm920, %v812
  %925 = vst.msk [vmem:[%s6 + $0x20] sm:$0xff] %vm920, %v817
  %926 = vst.msk [vmem:[%s6 + $0x28] sm:$0xff] %vm920, %v822
  %927 = vst.msk [vmem:[%s6 + $0x30] sm:$0xff] %vm920, %v827
  %928 = vst.msk [vmem:[%s6 + $0x38] sm:$0xff] %vm920, %v832
  %929 = vst.msk [vmem:[%s6 + $0x40] sm:$0xff] %vm920, %v837
  %930 = vst.msk [vmem:[%s6 + $0x48] sm:$0xff] %vm920, %v842
  %931 = vst.msk [vmem:[%s6 + $0x50] sm:$0xff] %vm920, %v847
  %932 = vst.msk [vmem:[%s6 + $0x58] sm:$0xff] %vm920, %v852
  %933 = vst.msk [vmem:[%s6 + $0x60] sm:$0xff] %vm920, %v857
  %934 = vst.msk [vmem:[%s6 + $0x68] sm:$0xff] %vm920, %v862
  %935 = vst.msk [vmem:[%s6 + $0x70] sm:$0xff] %vm920, %v867
  %936 = vst.msk [vmem:[%s6 + $0x78] sm:$0xff] %vm920, %v872
  %937 = vst.msk [vmem:[%s6 + $0x80] sm:$0xff] %vm920, %v877
  %938 = vst.msk [vmem:[%s6 + $0x88] sm:$0xff] %vm920, %v882
  %939 = vst.msk [vmem:[%s6 + $0x90] sm:$0xff] %vm920, %v887
  %940 = vst.msk [vmem:[%s6 + $0x98] sm:$0xff] %vm920, %v892
  %941 = vst.msk [vmem:[%s6 + $0xa0] sm:$0xff] %vm920, %v897
  %942 = vst.msk [vmem:[%s6 + $0xa8] sm:$0xff] %vm920, %v902
  %943 = vst.msk [vmem:[%s6 + $0xb0] sm:$0xff] %vm920, %v907
  %944 = vst.msk [vmem:[%s6 + $0xb8] sm:$0xff] %vm920, %v912
  %945 = vst.msk [vmem:[%s6 + $0xc0] sm:$0xff] %vm920, %v917
  // Predicated region
  $region26: #{tpu_custom_call.1} parent=0 // pred_check
    _
  $region27: #{tpu_custom_call.1} parent=0 // pred_check_branch
    %947 = sbr.rel (0) target = $region29
  $region28: #{tpu_custom_call.1} parent=0 // pred_region
    _
  $region29: #{tpu_custom_call.1} parent=0 // pred_fallthru
    _
  // Predicated region
  $region30: #{tpu_custom_call.1} parent=0 // pred_check
    _
  $region31: #{tpu_custom_call.1} parent=0 // pred_check_branch
    %949 = sbr.rel (0) target = $region33
  $region32: #{tpu_custom_call.1} parent=0 // pred_region
    _
  $region33: #{tpu_custom_call.1} parent=0 // pred_fallthru
    _

</llo_original>
